<compile_context>
chip_gen: v7x
topology: tpu7x:2x2x1
jax: 0.10.0
libtpu: 0.0.40
codegen_flags: <defaults>
</compile_context>

<pallas_src>
import jax
import jax.numpy as jnp
from jax.experimental import pallas as pl
from jax.experimental.pallas import tpu as pltpu


def linear_sub_relu_kernel(x_ref, wb_ref, o_ref):
    # x_ref : (B*K,)   in SMEM  (scalars)
    # wb_ref: (K+1, N) in VMEM  (rows 0..K-1 = W^T with N on lanes; row K = bias-7)
    # o_ref : (B, N)   in VMEM
    B, N = o_ref.shape
    K = wb_ref.shape[0] - 1
    for r in range(B):                       # B == 1; unrolled at trace time
        acc = wb_ref[pl.ds(K, 1), :]         # (1, N) bias row (already has -7 folded)
        for k in range(K):                   # K == 3; three VPU FMAs on (1, N)
            acc = acc + x_ref[r * K + k] * wb_ref[pl.ds(k, 1), :]
        o_ref[pl.ds(r, 1), :] = jnp.maximum(acc, 0.0).astype(o_ref.dtype)


def prepare_params(weight, bias):
    """One-time (init-time) parameter prep: transpose + fold the '-7' into bias,
    and pack both into a single (K+1, N) table so the kernel takes one VMEM input."""
    N, K = weight.shape                      # torch Linear layout: (out, in)
    wb = jnp.concatenate([weight.T, (bias - 7.0).reshape(1, N)], axis=0)
    return wb                                # (K+1, N)


def linear_sub_relu(x, wb):
    B, K = x.shape
    N = wb.shape[1]
    x_flat = x.reshape(B * K)                # free under jit (pure reshape)
    return pl.pallas_call(
        linear_sub_relu_kernel,
        out_shape=jax.ShapeDtypeStruct((B, N), jnp.float32),
        in_specs=[
            # x is only B*K scalars -> 1-D SMEM ref, cheap scalar indexing
            pl.BlockSpec(memory_space=pltpu.MemorySpace.SMEM),
            # packed [W^T ; bias-7] table, full-array block (<2 KiB)
            pl.BlockSpec(wb.shape, lambda: (0, 0),
                         memory_space=pltpu.MemorySpace.VMEM),
        ],
        out_specs=pl.BlockSpec((B, N), lambda: (0, 0),
                               memory_space=pltpu.MemorySpace.VMEM),
    )(x_flat, wb)


if __name__ == "__main__":
    key = jax.random.PRNGKey(0)
    kx, kw, kb = jax.random.split(key, 3)

    in_features, out_features, batch = 3, 64, 1

    # Input like torch.randn(1, 3)
    x1 = jax.random.normal(kx, (batch, in_features), dtype=jnp.float32)

    # Deterministic parameter init (mimics nn.Linear's uniform(-1/sqrt(in), 1/sqrt(in)))
    bound = 1.0 / jnp.sqrt(jnp.float32(in_features))
    weight = jax.random.uniform(kw, (out_features, in_features),
                                dtype=jnp.float32, minval=-bound, maxval=bound)
    bias = jax.random.uniform(kb, (out_features,),
                              dtype=jnp.float32, minval=-bound, maxval=bound)

    # Init-time prep (transpose + '-7' fold + pack) happens once, outside the call path.
    wb = jax.block_until_ready(prepare_params(weight, bias))

    fwd = jax.jit(linear_sub_relu)
    out = fwd(x1, wb)
    jax.block_until_ready(out)

    # Reference check in plain JAX
    ref = jnp.maximum(x1 @ weight.T + bias - 7.0, 0.0)
    assert out.shape == (batch, out_features)
    assert jnp.allclose(out, ref, atol=1e-5, rtol=1e-5)

    print("KERNEL_OK")
</pallas_src>

<mosaic_0001>
module attributes {stable_mosaic.version = 11 : i64} {
  func.func @linear_sub_relu_kernel(%arg0: memref<3xf32, #tpu.memory_space<smem>>, %arg1: memref<4x64xf32, #tpu.memory_space<vmem>>, %arg2: memref<1x64xf32, #tpu.memory_space<vmem>>) attributes {dimension_semantics = [], scalar_prefetch = 0 : i64, scratch_operands = 0 : i64, tpu.core_type = #tpu.core_type<tc>} {
    %c3 = arith.constant 3 : index
    %c0 = arith.constant 0 : index
    %0 = vector.load %arg1[%c3, %c0] : memref<4x64xf32, #tpu.memory_space<vmem>>, vector<1x64xf32>
    %c0_0 = arith.constant 0 : index
    %1 = memref.load %arg0[%c0_0] : memref<3xf32, #tpu.memory_space<smem>>
    %c0_1 = arith.constant 0 : index
    %c0_2 = arith.constant 0 : index
    %2 = vector.load %arg1[%c0_1, %c0_2] : memref<4x64xf32, #tpu.memory_space<vmem>>, vector<1x64xf32>
    %3 = vector.broadcast %1 : f32 to vector<1x64xf32>
    %4 = arith.mulf %3, %2 : vector<1x64xf32>
    %5 = arith.addf %0, %4 : vector<1x64xf32>
    %c1 = arith.constant 1 : index
    %6 = memref.load %arg0[%c1] : memref<3xf32, #tpu.memory_space<smem>>
    %c1_3 = arith.constant 1 : index
    %c0_4 = arith.constant 0 : index
    %7 = vector.load %arg1[%c1_3, %c0_4] : memref<4x64xf32, #tpu.memory_space<vmem>>, vector<1x64xf32>
    %8 = vector.broadcast %6 : f32 to vector<1x64xf32>
    %9 = arith.mulf %8, %7 : vector<1x64xf32>
    %10 = arith.addf %5, %9 : vector<1x64xf32>
    %c2 = arith.constant 2 : index
    %11 = memref.load %arg0[%c2] : memref<3xf32, #tpu.memory_space<smem>>
    %c2_5 = arith.constant 2 : index
    %c0_6 = arith.constant 0 : index
    %12 = vector.load %arg1[%c2_5, %c0_6] : memref<4x64xf32, #tpu.memory_space<vmem>>, vector<1x64xf32>
    %13 = vector.broadcast %11 : f32 to vector<1x64xf32>
    %14 = arith.mulf %13, %12 : vector<1x64xf32>
    %15 = arith.addf %10, %14 : vector<1x64xf32>
    %cst = arith.constant 0.000000e+00 : f32
    %16 = vector.broadcast %cst : f32 to vector<1x64xf32>
    %17 = arith.maximumf %15, %16 : vector<1x64xf32>
    %c0_7 = arith.constant 0 : index
    %c0_8 = arith.constant 0 : index
    %18 = vector.load %arg2[%c0_7, %c0_8] : memref<1x64xf32, #tpu.memory_space<vmem>>, vector<1x64xf32>
    tpu.vector_store %arg2[%c0_7, %c0_8], %17 {strides = array<i32>} : memref<1x64xf32, #tpu.memory_space<vmem>>, vector<1x64xf32>,
    return
  }
}

</mosaic_0001>

<llo_original>
// kernel: linear_sub_relu.1
$region0: #{linear_sub_relu.1}
  #allocation0 [shape = 'u32[]', space=smem, size = 0x4, offset = 0x4, fixed_abs, tag = 'smem constant byte address 0x4 - core index']
  #allocation1 [shape = 'u32[144,128]{1,0:T(1,128)}', space=vmem, size = 0x12000, scoped, tag = 'internal scratch']
  %s0 = inlined_call_operand.vmem [shape: f32[3], index: 0, kind: input, shape index: {}]
  %s1 = inlined_call_operand.vmem [shape: f32[4,64], index: 1, kind: input, shape index: {}]
  %s2 = inlined_call_operand.hbm [shape: f32[1,64], index: 2, kind: output, shape index: {}]
  %s3 = sld [smem:[#allocation0]]
  $region22: #{linear_sub_relu.1} parent=0
    _
  %s5 = ssub.s32 1, %s3
  %s6 = scalar_select 0, %s5, %s3
  $region1: #{linear_sub_relu.1} parent=0
    #allocation2 [shape = 'u8[512]{0}', space=smem, size = 0x200, scoped, tag = 'input window, operand 0, single buffered']
    #allocation3 [shape = 's32[1]{0}', space=sflag, size = 0x4, scoped, tag = 'scoped memory for linear_sub_relu.1']
    #allocation4 [shape = 's32[1]{0}', space=sflag, size = 0x4, scoped, tag = 'scoped memory for linear_sub_relu.1']
    #allocation5 [shape = 'u8[512]{0}', space=vmem, size = 0x400, scoped, tag = 'output window, operand 0, single buffered']
    %7 = vsyncpa [#allocation4], 0
    %8 = vsyncpa [#allocation3], 0
    // Predicated region
    $region2: #{linear_sub_relu.1} parent=1 // pred_check
      _
    $region3: #{linear_sub_relu.1} parent=1 // pred_check_branch
      %10 = sbr.rel (0) target = $region5
    $region4: #{linear_sub_relu.1} parent=1 // pred_region
      %s12 = ssub.s32 16, 16
      %13 = vsyncadd [#allocation4], %s12
      %s15 = sshll.u32 %s0, 4
      %s16 = int_to_ptr.vmem [resolvable:$true] %s15
      %18 = dma.vmem_to_smem %s16, 16, [#allocation2], [#allocation4]
    $region5: #{linear_sub_relu.1} parent=1 // pred_fallthru
      _
    // Predicated region
    $region6: #{linear_sub_relu.1} parent=1 // pred_check
      _
    $region7: #{linear_sub_relu.1} parent=1 // pred_check_branch
      %20 = sbr.rel (0) target = $region9
    $region8: #{linear_sub_relu.1} parent=1 // pred_region
      _
    $region9: #{linear_sub_relu.1} parent=1 // pred_fallthru
      _
    // Predicated region
    $region10: #{linear_sub_relu.1} parent=1 // pred_check
      _
    $region11: #{linear_sub_relu.1} parent=1 // pred_check_branch
      %22 = sbr.rel (0) target = $region13
    $region12: #{linear_sub_relu.1} parent=1 // pred_region
      %23 = dma.done [#allocation4], 16
    $region13: #{linear_sub_relu.1} parent=1 // pred_fallthru
      _
    %24 = sfence
    %v25 = vld [vmem:[%s1 + $0x3] sm:$0x1]
    %s26 = sld [smem:[#allocation2]]
    %v27 = vld [vmem:[%s1] sm:$0x1]
    %v28 = vstv %s26
    %v29 = vmul.f32 %v28, %v27
    %v30 = vadd.f32 %v25, %v29
    %s31 = sld [smem:[#allocation2 + $0x1]]
    %v32 = vld [vmem:[%s1 + $0x1] sm:$0x1]
    %v33 = vstv %s31
    %v34 = vmul.f32 %v33, %v32
    %v35 = vadd.f32 %v30, %v34
    %s36 = sld [smem:[#allocation2 + $0x2]]
    %v37 = vld [vmem:[%s1 + $0x2] sm:$0x1]
    %v38 = vstv %s36
    %v39 = vmul.f32 %v38, %v37
    %v40 = vadd.f32 %v35, %v39
    %v41 = vmax.f32 %v40, 0.0
    %vm42 = vcmask 516096
    %43 = vst.msk [vmem:[#allocation5] sm:$0x1] %vm42, %v41
    // Predicated region
    $region14: #{linear_sub_relu.1} parent=1 // pred_check
      _
    $region15: #{linear_sub_relu.1} parent=1 // pred_check_branch
      %45 = sbr.rel (0) target = $region17
    $region16: #{linear_sub_relu.1} parent=1 // pred_region
      %s47 = ssub.s32 16, 16
      %48 = vsyncadd [#allocation3], %s47
      %s50 = sshll.u32 [#allocation5], 4
      %s51 = int_to_ptr.vmem [resolvable:$true] %s50
      %53 = dma.vmem_to_hbm [thread:$0]  %s51, 16, %s2, [#allocation3]
    $region17: #{linear_sub_relu.1} parent=1 // pred_fallthru
      _
    // Predicated region
    $region18: #{linear_sub_relu.1} parent=1 // pred_check
      _
    $region19: #{linear_sub_relu.1} parent=1 // pred_check_branch
      %55 = sbr.rel (0) target = $region21
    $region20: #{linear_sub_relu.1} parent=1 // pred_region
      %56 = dma.done [#allocation3], 16
    $region21: #{linear_sub_relu.1} parent=1 // pred_fallthru
      _
    %57 = vsyncpa [#allocation3], 1
    %58 = vsyncpa [#allocation4], 1

</llo_original>
